<compile_context>
chip_gen: v5e
topology: v5e:2x2
jax: 0.10.0
libtpu: 0.0.40
codegen_flags: <defaults>
</compile_context>

<pallas_src>
import numpy as np
import jax
import jax.numpy as jnp
from jax import lax
from jax.experimental import pallas as pl
from jax.experimental.pallas import tpu as pltpu


BINS = [1, 2, 3, 4, 5, 8, 16, 32, 64]


def dist_to_bin_id(d):
    """Python port of Span_Distance_Embedding.dist_to_bin_id (host-side)."""
    for i in range(len(BINS) - 1):
        if BINS[i] <= d < BINS[i + 1]:
            return i
    return len(BINS) - 1


# ---------------------------------------------------------------------------
# Kernel 1: fused pair scorer (multi-hot phi on MXU + FFNN layers + score sum)
# Transposed layout: features on sublanes, pairs on the 128-lane axis, so all
# per-pair loads and the score store are lane-dense.
# ---------------------------------------------------------------------------
def pair_scorer_kernel(d_ref, g_ref, s_ref, aiT_ref, bjT_ref, smi_ref, smj_ref,
                       wphi_ref, b1_ref, w2T_ref, b2_ref, w3T_ref, b3_ref,
                       out_ref):
    # d/g/s_ref:  [1, tile] int32 (genre/speaker ids pre-offset into the Wphi columns)
    # aiT/bjT:    [H, tile]       per-span layer-1 partial sums, gathered + transposed
    # smi/smj:    [1, tile]       gathered mention scores
    # wphi_ref:   [H, 19]         embedding tables folded through W1
    # w2T: [H, H], w3T: [1, H], biases as column vectors
    # out_ref:    [1, tile]       coref scores (lane-dense)
    tile = d_ref.shape[1]
    n_phi = wphi_ref.shape[1]

    # One compare per table -> [n_phi, tile] multi-hot; one tiny MXU matmul
    # replaces the old 19-way VPU compare/broadcast/where chain.
    iota = lax.broadcasted_iota(jnp.int32, (n_phi, tile), 0)
    multi_hot = (iota == d_ref[...]) | (iota == g_ref[...]) | (iota == s_ref[...])
    phi1 = jnp.dot(wphi_ref[...], multi_hot.astype(wphi_ref.dtype),
                   preferred_element_type=jnp.float32)                 # [H, tile]

    # Layer 1 pre-activation assembled from per-span partial sums (no concat).
    h1 = jnp.maximum(
        aiT_ref[...].astype(jnp.float32) + bjT_ref[...].astype(jnp.float32)
        + phi1 + b1_ref[...], 0.0)
    # TODO(synk): training-mode dropout (p=0.2) between layers not applied (eval identity).
    h2 = jnp.maximum(
        jnp.dot(w2T_ref[...], h1.astype(w2T_ref.dtype),
                preferred_element_type=jnp.float32) + b2_ref[...], 0.0)
    s_ij = jnp.dot(w3T_ref[...], h2.astype(w3T_ref.dtype),
                   preferred_element_type=jnp.float32) + b3_ref[...]

    out_ref[...] = s_ij + smi_ref[...] + smj_ref[...]                  # lane-dense store


def antecedent_pair_scores(g_i, s_m, mention_ids, antecedent_ids,
                           dist_bins, genre_ids, speaker_ids,
                           dist_table, genre_table, speaker_table,
                           w1, b1, w2, b2, w3, b3, *,
                           tile=512, compute_dtype=jnp.float32):
    """Returns coref_scores [P] = s_m[i] + s_m[j] + FFNN(cat(features))."""
    P = int(mention_ids.shape[0])
    D = g_i.shape[1]
    H = w1.shape[1]
    embed_dim = dist_table.shape[1]
    n_dist = dist_table.shape[0]
    n_genre = genre_table.shape[0]

    # Clamp the pair tile for tiny docs (keeps lanes a multiple of 128 without
    # gross over-padding); default 512 amortizes the ~0.35us/step grid overhead
    # on real documents while fitting comfortably in v7x's 64 MiB VMEM.
    tile = max(128, min(tile, pl.cdiv(P, 128) * 128))
    P_pad = pl.cdiv(P, tile) * tile
    pad = P_pad - P

    def padi(x):
        return jnp.pad(x.astype(jnp.int32), (0, pad))

    m_ids = padi(mention_ids)
    a_ids = padi(antecedent_ids)
    d_row = padi(dist_bins)[None, :]
    g_row = (padi(genre_ids) + n_dist)[None, :]                 # offset into Wphi cols
    s_row = (padi(speaker_ids) + n_dist + n_genre)[None, :]

    # --- fold FFNN layer 1 per span / per embedding class (reads g_i exactly once) ---
    w1f = w1.astype(jnp.float32)
    A = g_i @ w1f[:D]                                           # [n_spans, H]  (vec_i part)
    Bv = g_i @ w1f[D:2 * D] + (g_i * g_i) @ w1f[2 * D:3 * D]    # [n_spans, H]  (vec_j, vec_j^2)
    off = 3 * D
    Wd = (dist_table @ w1f[off:off + embed_dim]).T              # [H, n_dist]
    Wg = (genre_table @ w1f[off + embed_dim:off + 2 * embed_dim]).T
    Ws = (speaker_table @ w1f[off + 2 * embed_dim:off + 3 * embed_dim]).T
    Wphi = jnp.concatenate([Wd, Wg, Ws], axis=1).astype(compute_dtype)  # [H, 19]

    # Layout plumbing (XLA side): gather the small [n_spans, H] partials and
    # transpose so pairs sit on the lane axis.
    aiT = A[m_ids].T.astype(compute_dtype)                      # [H, P_pad]
    bjT = Bv[a_ids].T.astype(compute_dtype)                     # [H, P_pad]
    smi = s_m[m_ids][None, :].astype(jnp.float32)               # [1, P_pad]
    smj = s_m[a_ids][None, :].astype(jnp.float32)
    b1c = b1[:, None].astype(jnp.float32)
    w2T = w2.T.astype(compute_dtype)
    b2c = b2[:, None].astype(jnp.float32)
    w3T = w3.T.astype(compute_dtype)
    b3c = b3[:, None].astype(jnp.float32)

    def tiled(rows):
        return pl.BlockSpec((rows, tile), lambda p: (0, p))

    def full(a):
        return pl.BlockSpec(a.shape, lambda p: (0, 0))

    scores = pl.pallas_call(
        pair_scorer_kernel,
        out_shape=jax.ShapeDtypeStruct((1, P_pad), jnp.float32),
        grid_spec=pltpu.PrefetchScalarGridSpec(
            num_scalar_prefetch=0,
            grid=(P_pad // tile,),
            in_specs=[
                tiled(1), tiled(1), tiled(1),          # dist / genre / speaker id rows
                tiled(H), tiled(H),                    # A_i^T, B_j^T
                tiled(1), tiled(1),                    # s_m[i], s_m[j]
                full(Wphi), full(b1c), full(w2T), full(b2c), full(w3T), full(b3c),
            ],
            out_specs=pl.BlockSpec((1, tile), lambda p: (0, p)),
        ),
        compiler_params=pltpu.CompilerParams(
            dimension_semantics=("parallel",),
            vmem_limit_bytes=48 * 1024 * 1024),
    )(d_row, g_row, s_row, aiT, bjT, smi, smj,
      Wphi, b1c, w2T, b2c, w3T, b3c)
    # Keep the [:P] slice: padded lanes compute garbage that must never feed a reduction.
    return scores[0, :P]


# ---------------------------------------------------------------------------
# Kernel 2: masked per-row softmax with 1000 padding (pad_sequence semantics)
# ---------------------------------------------------------------------------
def masked_softmax_kernel(x_ref, len_ref, out_ref):
    x = x_ref[...]                                           # [rt, L]
    lens = len_ref[...]                                      # [rt, 1]
    col = lax.broadcasted_iota(jnp.int32, x.shape, 1)
    valid = col < lens
    xm = jnp.where(valid, x, -1e30)
    m = jnp.max(xm, axis=1, keepdims=True)
    e = jnp.where(valid, jnp.exp(xm - m), 0.0)
    s = jnp.sum(e, axis=1, keepdims=True)
    # Guard fully-masked padding rows (lens==0) so 0/0 never appears; the divide
    # becomes a per-row reciprocal + VPU multiply.
    inv = pl.reciprocal(jnp.maximum(s, 1e-30), approx=False)
    out_ref[...] = jnp.where(valid, e * inv, 1000.0)


def ragged_softmax_probs(coref_scores, counts, *, row_tile=8):
    """Replicates split -> append epsilon -> softmax -> pad_sequence(value=1000)."""
    counts = [int(c) for c in counts]
    n_rows = len(counts) + 1                                 # leading empty split
    lens_np = np.array([1] + [c + 1 for c in counts], np.int32)   # +1 for epsilon
    max_len = int(lens_np.max())
    R_pad = ((n_rows + row_tile - 1) // row_tile) * row_tile
    L_pad = ((max_len + 127) // 128) * 128                   # lane-dense rows
    P = int(coref_scores.shape[0])

    # Single precomputed gather index (numpy, host-side) + one jnp.take instead of
    # O(rows) dynamic_update_slice ops.  Index P points at the appended 0.0 epsilon.
    gather_idx = np.full((R_pad, L_pad), P, np.int32)
    offs = np.concatenate([[0], np.cumsum(counts)]).astype(np.int64)
    for r, c in enumerate(counts):
        gather_idx[r + 1, :c] = offs[r] + np.arange(c)
    src = jnp.concatenate([coref_scores.astype(jnp.float32),
                           jnp.zeros((1,), jnp.float32)])    # [P+1], last = epsilon
    dense = jnp.take(src, jnp.asarray(gather_idx), axis=0)   # [R_pad, L_pad]
    lens = jnp.asarray(np.pad(lens_np, (0, R_pad - n_rows)).astype(np.int32))[:, None]

    probs = pl.pallas_call(
        masked_softmax_kernel,
        out_shape=jax.ShapeDtypeStruct((R_pad, L_pad), jnp.float32),
        grid_spec=pltpu.PrefetchScalarGridSpec(
            num_scalar_prefetch=0,
            grid=(R_pad // row_tile,),
            in_specs=[pl.BlockSpec((row_tile, L_pad), lambda r: (r, 0)),
                      pl.BlockSpec((row_tile, 1), lambda r: (r, 0))],
            out_specs=pl.BlockSpec((row_tile, L_pad), lambda r: (r, 0)),
        ),
        compiler_params=pltpu.CompilerParams(dimension_semantics=("parallel",)),
    )(dense, lens)
    return probs[:n_rows, :max_len]


# ---------------------------------------------------------------------------
# Pure-JAX reference (mirrors the PyTorch forward, eval mode)
# ---------------------------------------------------------------------------
def reference_forward(g_i, s_m, m_ids, a_ids, d_ids, gn_ids, sp_ids,
                      dist_table, genre_table, speaker_table,
                      w1, b1, w2, b2, w3, b3, counts, pad_value=1000.0):
    vec_i = g_i[m_ids]
    vec_j = g_i[a_ids]
    phi = jnp.concatenate([dist_table[d_ids], genre_table[gn_ids],
                           speaker_table[sp_ids]], axis=1)
    x = jnp.concatenate([vec_i, vec_j, vec_j * vec_j, phi], axis=1)
    h1 = jnp.maximum(x @ w1 + b1, 0.0)
    h2 = jnp.maximum(h1 @ w2 + b2, 0.0)
    s_ij = (h2 @ w3 + b3)[:, 0]
    coref = s_ij + s_m[m_ids] + s_m[a_ids]

    rows = [jnp.zeros((1,), jnp.float32)]
    off = 0
    for c in counts:
        rows.append(jnp.concatenate([coref[off:off + c],
                                     jnp.zeros((1,), jnp.float32)]))
        off += c
    max_len = max(int(r.shape[0]) for r in rows)
    padded = []
    for r in rows:
        p = jax.nn.softmax(r)
        padded.append(jnp.concatenate(
            [p, jnp.full((max_len - p.shape[0],), pad_value, jnp.float32)]))
    return coref, jnp.stack(padded, axis=0)


if __name__ == "__main__":
    n_spans = 8
    D = 32                     # span representation size (g_i columns)
    embed_dim = 20
    n_neurons = 150
    n_genres = 7
    doc_genre = 3
    in_size = 3 * D + 3 * embed_dim   # 156

    key = jax.random.PRNGKey(0)
    ks = jax.random.split(key, 11)
    g_i = jax.random.normal(ks[0], (n_spans, D), dtype=jnp.float32)
    s_m = jax.random.normal(ks[1], (n_spans,), dtype=jnp.float32)
    dist_table = jax.random.normal(ks[2], (len(BINS), embed_dim), dtype=jnp.float32)
    genre_table = jax.random.normal(ks[3], (n_genres, embed_dim), dtype=jnp.float32)
    speaker_table = jax.random.normal(ks[4], (3, embed_dim), dtype=jnp.float32)
    w1 = jax.random.normal(ks[5], (in_size, n_neurons), dtype=jnp.float32) / jnp.sqrt(in_size)
    b1 = 0.1 * jax.random.normal(ks[6], (n_neurons,), dtype=jnp.float32)
    w2 = jax.random.normal(ks[7], (n_neurons, n_neurons), dtype=jnp.float32) / jnp.sqrt(n_neurons)
    b2 = 0.1 * jax.random.normal(ks[8], (n_neurons,), dtype=jnp.float32)
    w3 = jax.random.normal(ks[9], (n_neurons, 1), dtype=jnp.float32) / jnp.sqrt(n_neurons)
    b3 = 0.1 * jax.random.normal(ks[10], (1,), dtype=jnp.float32)

    # Deterministic synthetic spans (host-side pair enumeration, like the PyTorch code).
    starts = [5 * i for i in range(n_spans)]
    widths = [2, 3, 1, 4, 2, 3, 2, 1]
    ends = [s + w for s, w in zip(starts, widths)]
    span_speaker = [0, 1, 1, 0, 2, 1, 0, 2]

    mention_ids, antecedent_ids = [], []
    dist_bins, genre_ids, speaker_ids = [], [], []
    counts = []
    for i in range(n_spans):
        yi = list(range(max(0, i - 3), i))       # candidate antecedents
        if yi:
            counts.append(len(yi))
        for j in yi:
            mention_ids.append(i)
            antecedent_ids.append(j)
            dist_bins.append(dist_to_bin_id(ends[i] - starts[j]))
            genre_ids.append(doc_genre)
            speaker_ids.append(1 if span_speaker[i] == span_speaker[j] else 2)

    m_ids = jnp.array(mention_ids, jnp.int32)
    a_ids = jnp.array(antecedent_ids, jnp.int32)
    d_ids = jnp.array(dist_bins, jnp.int32)
    gn_ids = jnp.array(genre_ids, jnp.int32)
    sp_ids = jnp.array(speaker_ids, jnp.int32)

    coref_scores = antecedent_pair_scores(
        g_i, s_m, m_ids, a_ids, d_ids, gn_ids, sp_ids,
        dist_table, genre_table, speaker_table,
        w1, b1, w2, b2, w3, b3)
    probs = ragged_softmax_probs(coref_scores, counts)
    coref_scores = jax.block_until_ready(coref_scores)
    probs = jax.block_until_ready(probs)

    ref_scores, ref_probs = reference_forward(
        g_i, s_m, m_ids, a_ids, d_ids, gn_ids, sp_ids,
        dist_table, genre_table, speaker_table,
        w1, b1, w2, b2, w3, b3, counts)

    assert coref_scores.shape == (len(mention_ids),)
    assert probs.shape == ref_probs.shape
    assert jnp.allclose(coref_scores, ref_scores, atol=1e-3, rtol=1e-3), \
        "pair score mismatch vs reference"
    assert jnp.allclose(probs, ref_probs, atol=1e-3, rtol=1e-3), \
        "probs mismatch vs reference"

    print("KERNEL_OK")
</pallas_src>

<mosaic_0001>
module attributes {stable_mosaic.version = 11 : i64} {
  func.func @pair_scorer_kernel(%arg0: i32, %arg1: memref<1x128xi32, #tpu.memory_space<vmem>>, %arg2: memref<1x128xi32, #tpu.memory_space<vmem>>, %arg3: memref<1x128xi32, #tpu.memory_space<vmem>>, %arg4: memref<150x128xf32, #tpu.memory_space<vmem>>, %arg5: memref<150x128xf32, #tpu.memory_space<vmem>>, %arg6: memref<1x128xf32, #tpu.memory_space<vmem>>, %arg7: memref<1x128xf32, #tpu.memory_space<vmem>>, %arg8: memref<150x19xf32, #tpu.memory_space<vmem>>, %arg9: memref<150x1xf32, #tpu.memory_space<vmem>>, %arg10: memref<150x150xf32, #tpu.memory_space<vmem>>, %arg11: memref<150x1xf32, #tpu.memory_space<vmem>>, %arg12: memref<1x150xf32, #tpu.memory_space<vmem>>, %arg13: memref<1x1xf32, #tpu.memory_space<vmem>>, %arg14: memref<1x128xf32, #tpu.memory_space<vmem>>) attributes {dimension_semantics = [#tpu.dimension_semantics<parallel>], iteration_bounds = array<i64: 1>, scalar_prefetch = 0 : i64, scratch_operands = 0 : i64, tpu.core_type = #tpu.core_type<tc>, window_params = [{transform_indices = @transform_0, window_bounds = array<i64: 1, 128>}, {transform_indices = @transform_1, window_bounds = array<i64: 1, 128>}, {transform_indices = @transform_2, window_bounds = array<i64: 1, 128>}, {transform_indices = @transform_3, window_bounds = array<i64: 150, 128>}, {transform_indices = @transform_4, window_bounds = array<i64: 150, 128>}, {transform_indices = @transform_5, window_bounds = array<i64: 1, 128>}, {transform_indices = @transform_6, window_bounds = array<i64: 1, 128>}, {pipeline_mode = #tpu.pipeline_mode<synchronous>, transform_indices = @transform_7, window_bounds = array<i64: 150, 19>}, {pipeline_mode = #tpu.pipeline_mode<synchronous>, transform_indices = @transform_8, window_bounds = array<i64: 150, 1>}, {pipeline_mode = #tpu.pipeline_mode<synchronous>, transform_indices = @transform_9, window_bounds = array<i64: 150, 150>}, {pipeline_mode = #tpu.pipeline_mode<synchronous>, transform_indices = @transform_10, window_bounds = array<i64: 150, 1>}, {pipeline_mode = #tpu.pipeline_mode<synchronous>, transform_indices = @transform_11, window_bounds = array<i64: 1, 150>}, {pipeline_mode = #tpu.pipeline_mode<synchronous>, transform_indices = @transform_12, window_bounds = array<i64: 1, 1>}, {transform_indices = @transform_13, window_bounds = array<i64: 1, 128>}]} {
    %0 = tpu.iota {dimensions = array<i32: 0>} : vector<19x128xi32>
    %c0 = arith.constant 0 : index
    %c0_0 = arith.constant 0 : index
    %1 = vector.load %arg1[%c0, %c0_0] : memref<1x128xi32, #tpu.memory_space<vmem>>, vector<1x128xi32>
    %2 = vector.broadcast %1 : vector<1x128xi32> to vector<19x128xi32>
    %3 = arith.cmpi eq, %0, %2 : vector<19x128xi32>
    %c0_1 = arith.constant 0 : index
    %c0_2 = arith.constant 0 : index
    %4 = vector.load %arg2[%c0_1, %c0_2] : memref<1x128xi32, #tpu.memory_space<vmem>>, vector<1x128xi32>
    %5 = vector.broadcast %4 : vector<1x128xi32> to vector<19x128xi32>
    %6 = arith.cmpi eq, %0, %5 : vector<19x128xi32>
    %7 = arith.ori %3, %6 : vector<19x128xi1>
    %c0_3 = arith.constant 0 : index
    %c0_4 = arith.constant 0 : index
    %8 = vector.load %arg3[%c0_3, %c0_4] : memref<1x128xi32, #tpu.memory_space<vmem>>, vector<1x128xi32>
    %9 = vector.broadcast %8 : vector<1x128xi32> to vector<19x128xi32>
    %10 = arith.cmpi eq, %0, %9 : vector<19x128xi32>
    %11 = arith.ori %7, %10 : vector<19x128xi1>
    %c0_5 = arith.constant 0 : index
    %c0_6 = arith.constant 0 : index
    %12 = vector.load %arg8[%c0_5, %c0_6] : memref<150x19xf32, #tpu.memory_space<vmem>>, vector<150x19xf32>
    %13 = arith.extui %11 : vector<19x128xi1> to vector<19x128xi32>
    %14 = arith.sitofp %13 : vector<19x128xi32> to vector<19x128xf32>
    %cst = arith.constant dense<0.000000e+00> : vector<150x128xf32>
    %15 = tpu.matmul %12, %14, %cst {dimension_numbers = #tpu.dot_dimension_numbers<[1], [0], [0], [1], [0, 0, 1, 1], [], []>} : vector<150x19xf32>, vector<19x128xf32>, vector<150x128xf32> -> vector<150x128xf32>
    %c0_7 = arith.constant 0 : index
    %c0_8 = arith.constant 0 : index
    %16 = vector.load %arg4[%c0_7, %c0_8] : memref<150x128xf32, #tpu.memory_space<vmem>>, vector<150x128xf32>
    %c0_9 = arith.constant 0 : index
    %c0_10 = arith.constant 0 : index
    %17 = vector.load %arg5[%c0_9, %c0_10] : memref<150x128xf32, #tpu.memory_space<vmem>>, vector<150x128xf32>
    %18 = arith.addf %16, %17 : vector<150x128xf32>
    %19 = arith.addf %18, %15 : vector<150x128xf32>
    %c0_11 = arith.constant 0 : index
    %c0_12 = arith.constant 0 : index
    %20 = vector.load %arg9[%c0_11, %c0_12] : memref<150x1xf32, #tpu.memory_space<vmem>>, vector<150x1xf32>
    %21 = vector.broadcast %20 : vector<150x1xf32> to vector<150x128xf32>
    %22 = arith.addf %19, %21 : vector<150x128xf32>
    %cst_13 = arith.constant 0.000000e+00 : f32
    %23 = vector.broadcast %cst_13 : f32 to vector<150x128xf32>
    %24 = arith.maximumf %22, %23 : vector<150x128xf32>
    %c0_14 = arith.constant 0 : index
    %c0_15 = arith.constant 0 : index
    %25 = vector.load %arg10[%c0_14, %c0_15] : memref<150x150xf32, #tpu.memory_space<vmem>>, vector<150x150xf32>
    %cst_16 = arith.constant dense<0.000000e+00> : vector<150x128xf32>
    %26 = tpu.matmul %25, %24, %cst_16 {dimension_numbers = #tpu.dot_dimension_numbers<[1], [0], [0], [1], [0, 0, 1, 1], [], []>} : vector<150x150xf32>, vector<150x128xf32>, vector<150x128xf32> -> vector<150x128xf32>
    %c0_17 = arith.constant 0 : index
    %c0_18 = arith.constant 0 : index
    %27 = vector.load %arg11[%c0_17, %c0_18] : memref<150x1xf32, #tpu.memory_space<vmem>>, vector<150x1xf32>
    %28 = vector.broadcast %27 : vector<150x1xf32> to vector<150x128xf32>
    %29 = arith.addf %26, %28 : vector<150x128xf32>
    %cst_19 = arith.constant 0.000000e+00 : f32
    %30 = vector.broadcast %cst_19 : f32 to vector<150x128xf32>
    %31 = arith.maximumf %29, %30 : vector<150x128xf32>
    %c0_20 = arith.constant 0 : index
    %c0_21 = arith.constant 0 : index
    %32 = vector.load %arg12[%c0_20, %c0_21] : memref<1x150xf32, #tpu.memory_space<vmem>>, vector<1x150xf32>
    %cst_22 = arith.constant dense<0.000000e+00> : vector<1x128xf32>
    %33 = tpu.matmul %32, %31, %cst_22 {dimension_numbers = #tpu.dot_dimension_numbers<[1], [0], [0], [1], [0, 0, 1, 1], [], []>} : vector<1x150xf32>, vector<150x128xf32>, vector<1x128xf32> -> vector<1x128xf32>
    %c0_23 = arith.constant 0 : index
    %c0_24 = arith.constant 0 : index
    %34 = vector.load %arg13[%c0_23, %c0_24] : memref<1x1xf32, #tpu.memory_space<vmem>>, vector<1x1xf32>
    %35 = vector.broadcast %34 : vector<1x1xf32> to vector<1x128xf32>
    %36 = arith.addf %33, %35 : vector<1x128xf32>
    %c0_25 = arith.constant 0 : index
    %c0_26 = arith.constant 0 : index
    %37 = vector.load %arg6[%c0_25, %c0_26] : memref<1x128xf32, #tpu.memory_space<vmem>>, vector<1x128xf32>
    %38 = arith.addf %36, %37 : vector<1x128xf32>
    %c0_27 = arith.constant 0 : index
    %c0_28 = arith.constant 0 : index
    %39 = vector.load %arg7[%c0_27, %c0_28] : memref<1x128xf32, #tpu.memory_space<vmem>>, vector<1x128xf32>
    %40 = arith.addf %38, %39 : vector<1x128xf32>
    %c0_29 = arith.constant 0 : index
    %c0_30 = arith.constant 0 : index
    %41 = vector.load %arg14[%c0_29, %c0_30] : memref<1x128xf32, #tpu.memory_space<vmem>>, vector<1x128xf32>
    tpu.vector_store %arg14[%c0_29, %c0_30], %40 {strides = array<i32>} : memref<1x128xf32, #tpu.memory_space<vmem>>, vector<1x128xf32>,
    return
  }
  func.func @transform_0(%arg0: i32) -> (i32, i32) {
    %c0_i32 = arith.constant 0 : i32
    %c0_i32_0 = arith.constant 0 : i32
    return %c0_i32, %arg0 : i32, i32
  }
  func.func @transform_1(%arg0: i32) -> (i32, i32) {
    %c0_i32 = arith.constant 0 : i32
    %c0_i32_0 = arith.constant 0 : i32
    return %c0_i32, %arg0 : i32, i32
  }
  func.func @transform_2(%arg0: i32) -> (i32, i32) {
    %c0_i32 = arith.constant 0 : i32
    %c0_i32_0 = arith.constant 0 : i32
    return %c0_i32, %arg0 : i32, i32
  }
  func.func @transform_3(%arg0: i32) -> (i32, i32) {
    %c0_i32 = arith.constant 0 : i32
    %c0_i32_0 = arith.constant 0 : i32
    return %c0_i32, %arg0 : i32, i32
  }
  func.func @transform_4(%arg0: i32) -> (i32, i32) {
    %c0_i32 = arith.constant 0 : i32
    %c0_i32_0 = arith.constant 0 : i32
    return %c0_i32, %arg0 : i32, i32
  }
  func.func @transform_5(%arg0: i32) -> (i32, i32) {
    %c0_i32 = arith.constant 0 : i32
    %c0_i32_0 = arith.constant 0 : i32
    return %c0_i32, %arg0 : i32, i32
  }
  func.func @transform_6(%arg0: i32) -> (i32, i32) {
    %c0_i32 = arith.constant 0 : i32
    %c0_i32_0 = arith.constant 0 : i32
    return %c0_i32, %arg0 : i32, i32
  }
  func.func @transform_7(%arg0: i32) -> (i32, i32) {
    %c0_i32 = arith.constant 0 : i32
    %c0_i32_0 = arith.constant 0 : i32
    %c0_i32_1 = arith.constant 0 : i32
    return %c0_i32, %c0_i32_0 : i32, i32
  }
  func.func @transform_8(%arg0: i32) -> (i32, i32) {
    %c0_i32 = arith.constant 0 : i32
    %c0_i32_0 = arith.constant 0 : i32
    %c0_i32_1 = arith.constant 0 : i32
    return %c0_i32, %c0_i32_0 : i32, i32
  }
  func.func @transform_9(%arg0: i32) -> (i32, i32) {
    %c0_i32 = arith.constant 0 : i32
    %c0_i32_0 = arith.constant 0 : i32
    %c0_i32_1 = arith.constant 0 : i32
    return %c0_i32, %c0_i32_0 : i32, i32
  }
  func.func @transform_10(%arg0: i32) -> (i32, i32) {
    %c0_i32 = arith.constant 0 : i32
    %c0_i32_0 = arith.constant 0 : i32
    %c0_i32_1 = arith.constant 0 : i32
    return %c0_i32, %c0_i32_0 : i32, i32
  }
  func.func @transform_11(%arg0: i32) -> (i32, i32) {
    %c0_i32 = arith.constant 0 : i32
    %c0_i32_0 = arith.constant 0 : i32
    %c0_i32_1 = arith.constant 0 : i32
    return %c0_i32, %c0_i32_0 : i32, i32
  }
  func.func @transform_12(%arg0: i32) -> (i32, i32) {
    %c0_i32 = arith.constant 0 : i32
    %c0_i32_0 = arith.constant 0 : i32
    %c0_i32_1 = arith.constant 0 : i32
    return %c0_i32, %c0_i32_0 : i32, i32
  }
  func.func @transform_13(%arg0: i32) -> (i32, i32) {
    %c0_i32 = arith.constant 0 : i32
    %c0_i32_0 = arith.constant 0 : i32
    return %c0_i32, %arg0 : i32, i32
  }
}

</mosaic_0001>

<llo_original>
// kernel: tpu_custom_call.1
$region0: #{tpu_custom_call.1}
  #allocation0 [shape = 'u32[]', space=smem, size = 0x4, offset = 0x4, fixed_abs, tag = 'smem constant byte address 0x4 - core index']
  #allocation1 [shape = 'u32[72,128]{1,0:T(1,128)}', space=vmem, size = 0x9000, scoped, tag = 'internal scratch']
  #allocation2 [shape = 'f32[1,1]{1,0:T(1,128)S(1)}', space=vmem, size = 0x200, scoped, tag = 'scoped memory for tpu_custom_call.1']
  %s0 = inlined_call_operand.vmem [shape: s32[1,128], index: 0, kind: input, shape index: {}]
  %s1 = inlined_call_operand.vmem [shape: s32[1,128], index: 1, kind: input, shape index: {}]
  %s2 = inlined_call_operand.vmem [shape: s32[1,128], index: 2, kind: input, shape index: {}]
  %s3 = inlined_call_operand.vmem [shape: f32[150,128], index: 3, kind: input, shape index: {}]
  %s4 = inlined_call_operand.hbm [shape: f32[150,128], index: 4, kind: input, shape index: {}]
  %s5 = inlined_call_operand.vmem [shape: f32[1,128], index: 5, kind: input, shape index: {}]
  %s6 = inlined_call_operand.vmem [shape: f32[1,128], index: 6, kind: input, shape index: {}]
  %s7 = inlined_call_operand.vmem [shape: f32[150,19], index: 7, kind: input, shape index: {}]
  %s8 = inlined_call_operand.vmem [shape: f32[150,1], index: 8, kind: input, shape index: {}]
  %s9 = inlined_call_operand.vmem [shape: f32[150,150], index: 9, kind: input, shape index: {}]
  %s10 = inlined_call_operand.vmem [shape: f32[150,1], index: 10, kind: input, shape index: {}]
  %s11 = inlined_call_operand.vmem [shape: f32[1,150], index: 11, kind: input, shape index: {}]
  %s12 = inlined_call_operand.<no memory space> [shape: f32[1,1], index: 12, kind: input, shape index: {}]
  %s13 = inlined_call_operand.hbm [shape: f32[1,128], index: 13, kind: output, shape index: {}]
  %s14 = sld [smem:[#allocation0]]
  $region66: #{tpu_custom_call.1} parent=0
    _
  %s16 = ssub.s32 1, %s14
  %s17 = scalar_select 0, %s16, %s14
  %v18 = vstv %s12
  %19 = vst [vmem:[#allocation2] sm:$0x1] %v18
  $region1: #{tpu_custom_call.1} parent=0
    #allocation3 [shape = 'u8[77824]{0}', space=vmem, size = 0x13000, scoped, tag = 'input window, operand 4, single buffered']
    #allocation4 [shape = 's32[1]{0}', space=sflag, size = 0x4, scoped, tag = 'scoped memory for tpu_custom_call.1']
    #allocation5 [shape = 's32[1]{0}', space=sflag, size = 0x4, scoped, tag = 'scoped memory for tpu_custom_call.1']
    #allocation6 [shape = 'u8[512]{0}', space=vmem, size = 0x400, scoped, tag = 'output window, operand 0, single buffered']
    %20 = vsyncpa [#allocation4], 0
    %21 = vsyncpa [#allocation5], 0
    // Predicated region
    $region2: #{tpu_custom_call.1} parent=1 // pred_check
      _
    $region3: #{tpu_custom_call.1} parent=1 // pred_check_branch
      %23 = sbr.rel (0) target = $region5
    $region4: #{tpu_custom_call.1} parent=1 // pred_region
      _
    $region5: #{tpu_custom_call.1} parent=1 // pred_fallthru
      _
    // Predicated region
    $region6: #{tpu_custom_call.1} parent=1 // pred_check
      _
    $region7: #{tpu_custom_call.1} parent=1 // pred_check_branch
      %25 = sbr.rel (0) target = $region9
    $region8: #{tpu_custom_call.1} parent=1 // pred_region
      _
    $region9: #{tpu_custom_call.1} parent=1 // pred_fallthru
      _
    // Predicated region
    $region10: #{tpu_custom_call.1} parent=1 // pred_check
      _
    $region11: #{tpu_custom_call.1} parent=1 // pred_check_branch
      %27 = sbr.rel (0) target = $region13
    $region12: #{tpu_custom_call.1} parent=1 // pred_region
      _
    $region13: #{tpu_custom_call.1} parent=1 // pred_fallthru
      _
    // Predicated region
    $region14: #{tpu_custom_call.1} parent=1 // pred_check
      _
    $region15: #{tpu_custom_call.1} parent=1 // pred_check_branch
      %29 = sbr.rel (0) target = $region17
    $region16: #{tpu_custom_call.1} parent=1 // pred_region
      _
    $region17: #{tpu_custom_call.1} parent=1 // pred_fallthru
      _
    // Predicated region
    $region18: #{tpu_custom_call.1} parent=1 // pred_check
      _
    $region19: #{tpu_custom_call.1} parent=1 // pred_check_branch
      %31 = sbr.rel (0) target = $region21
    $region20: #{tpu_custom_call.1} parent=1 // pred_region
      %33 = vsyncadd [#allocation4], 0
      %s34 = sshll.u32 %s4, 4
      %s35 = int_to_ptr.hbm [resolvable:$true] %s34
      %s36 = sshll.u32 [#allocation3], 4
      %s37 = int_to_ptr.vmem [resolvable:$true] %s36
      %42 = dma.hbm_to_vmem [thread:$0]  %s35, 2432, %s37, [#allocation4], 128, 128, 8
    $region21: #{tpu_custom_call.1} parent=1 // pred_fallthru
      _
    // Predicated region
    $region22: #{tpu_custom_call.1} parent=1 // pred_check
      _
    $region23: #{tpu_custom_call.1} parent=1 // pred_check_branch
      %44 = sbr.rel (0) target = $region25
    $region24: #{tpu_custom_call.1} parent=1 // pred_region
      _
    $region25: #{tpu_custom_call.1} parent=1 // pred_fallthru
      _
    // Predicated region
    $region26: #{tpu_custom_call.1} parent=1 // pred_check
      _
    $region27: #{tpu_custom_call.1} parent=1 // pred_check_branch
      %46 = sbr.rel (0) target = $region29
    $region28: #{tpu_custom_call.1} parent=1 // pred_region
      _
    $region29: #{tpu_custom_call.1} parent=1 // pred_fallthru
      _
    // Predicated region
    $region30: #{tpu_custom_call.1} parent=1 // pred_check
      _
    $region31: #{tpu_custom_call.1} parent=1 // pred_check_branch
      %48 = sbr.rel (0) target = $region33
    $region32: #{tpu_custom_call.1} parent=1 // pred_region
      _
    $region33: #{tpu_custom_call.1} parent=1 // pred_fallthru
      _
    // Predicated region
    $region34: #{tpu_custom_call.1} parent=1 // pred_check
      _
    $region35: #{tpu_custom_call.1} parent=1 // pred_check_branch
      %50 = sbr.rel (0) target = $region37
    $region36: #{tpu_custom_call.1} parent=1 // pred_region
      _
    $region37: #{tpu_custom_call.1} parent=1 // pred_fallthru
      _
    // Predicated region
    $region38: #{tpu_custom_call.1} parent=1 // pred_check
      _
    $region39: #{tpu_custom_call.1} parent=1 // pred_check_branch
      %52 = sbr.rel (0) target = $region41
    $region40: #{tpu_custom_call.1} parent=1 // pred_region
      _
    $region41: #{tpu_custom_call.1} parent=1 // pred_fallthru
      _
    // Predicated region
    $region42: #{tpu_custom_call.1} parent=1 // pred_check
      _
    $region43: #{tpu_custom_call.1} parent=1 // pred_check_branch
      %54 = sbr.rel (0) target = $region45
    $region44: #{tpu_custom_call.1} parent=1 // pred_region
      _
    $region45: #{tpu_custom_call.1} parent=1 // pred_fallthru
      _
    // Predicated region
    $region46: #{tpu_custom_call.1} parent=1 // pred_check
      _
    $region47: #{tpu_custom_call.1} parent=1 // pred_check_branch
      %56 = sbr.rel (0) target = $region49
    $region48: #{tpu_custom_call.1} parent=1 // pred_region
      _
    $region49: #{tpu_custom_call.1} parent=1 // pred_fallthru
      _
    // Predicated region
    $region50: #{tpu_custom_call.1} parent=1 // pred_check
      _
    $region51: #{tpu_custom_call.1} parent=1 // pred_check_branch
      %58 = sbr.rel (0) target = $region53
    $region52: #{tpu_custom_call.1} parent=1 // pred_region
      _
    $region53: #{tpu_custom_call.1} parent=1 // pred_fallthru
      _
    // Predicated region
    $region54: #{tpu_custom_call.1} parent=1 // pred_check
      _
    $region55: #{tpu_custom_call.1} parent=1 // pred_check_branch
      %60 = sbr.rel (0) target = $region57
    $region56: #{tpu_custom_call.1} parent=1 // pred_region
      %62 = dma.done [#allocation4], 2432
    $region57: #{tpu_custom_call.1} parent=1 // pred_fallthru
      _
    %v63 = vlaneseq
    %v64 = vshrl.u32 %v63, 7
    %v65 = vadd.s32 %v64, 8
    %v66 = vadd.s32 %v64, 16
    %v67 = vld [vmem:[%s0] sm:$0x1]
    %v68 = vperm.slane %v67, 0
    %vm69 = vcmp.eq.s32.totalorder %v64, %v68
    %vm70 = vcmp.eq.s32.totalorder %v65, %v68
    %vm71 = vcmp.eq.s32.totalorder %v66, %v68
    %v72 = vld [vmem:[%s1] sm:$0x1]
    %v73 = vperm.slane %v72, 0
    %vm74 = vcmp.eq.s32.totalorder %v64, %v73
    %vm75 = vcmp.eq.s32.totalorder %v65, %v73
    %vm76 = vcmp.eq.s32.totalorder %v66, %v73
    %vm77 = vmor %vm69, %vm74
    %vm78 = vmor %vm70, %vm75
    %vm79 = vmor %vm71, %vm76
    %v80 = vld [vmem:[%s2] sm:$0x1]
    %v81 = vperm.slane %v80, 0
    %vm82 = vcmp.eq.s32.totalorder %v64, %v81
    %vm83 = vcmp.eq.s32.totalorder %v65, %v81
    %vm84 = vcmp.eq.s32.totalorder %v66, %v81
    %vm85 = vmor %vm77, %vm82
    %vm86 = vmor %vm78, %vm83
    %vm87 = vmor %vm79, %vm84
    %v88 = vld [vmem:[%s7] sm:$0xff]
    %v89 = vld [vmem:[%s7 + $0x8] sm:$0xff]
    %v90 = vld [vmem:[%s7 + $0x10] sm:$0xff]
    %v91 = vld [vmem:[%s7 + $0x18] sm:$0xff]
    %v92 = vld [vmem:[%s7 + $0x20] sm:$0xff]
    %v93 = vld [vmem:[%s7 + $0x28] sm:$0xff]
    %v94 = vld [vmem:[%s7 + $0x30] sm:$0xff]
    %v95 = vld [vmem:[%s7 + $0x38] sm:$0xff]
    %v96 = vld [vmem:[%s7 + $0x40] sm:$0xff]
    %v97 = vld [vmem:[%s7 + $0x48] sm:$0xff]
    %v98 = vld [vmem:[%s7 + $0x50] sm:$0xff]
    %v99 = vld [vmem:[%s7 + $0x58] sm:$0xff]
    %v100 = vld [vmem:[%s7 + $0x60] sm:$0xff]
    %v101 = vld [vmem:[%s7 + $0x68] sm:$0xff]
    %v102 = vld [vmem:[%s7 + $0x70] sm:$0xff]
    %v103 = vld [vmem:[%s7 + $0x78] sm:$0xff]
    %v104 = vld [vmem:[%s7 + $0x80] sm:$0xff]
    %v105 = vld [vmem:[%s7 + $0x88] sm:$0xff]
    %v106 = vld [vmem:[%s7 + $0x90] sm:$0x3f]
    %v107 = vsel %vm85, 1, 0
    %v108 = vsel %vm86, 1, 0
    %v109 = vsel %vm87, 1, 0
    %v110 = vcvt.s32.f32 %v107
    %v111 = vcvt.s32.f32 %v108
    %v112 = vcvt.s32.f32 %v109
    %vm113 = vcmask 154624
    %v115 = vsel %vm113, %v88, 0
    %v118 = vsel %vm113, %v89, 0
    %v121 = vsel %vm113, %v90, 0
    %v124 = vsel %vm113, %v91, 0
    %v127 = vsel %vm113, %v92, 0
    %v130 = vsel %vm113, %v93, 0
    %v133 = vsel %vm113, %v94, 0
    %v136 = vsel %vm113, %v95, 0
    %v139 = vsel %vm113, %v96, 0
    %v142 = vsel %vm113, %v97, 0
    %v145 = vsel %vm113, %v98, 0
    %v148 = vsel %vm113, %v99, 0
    %v151 = vsel %vm113, %v100, 0
    %v154 = vsel %vm113, %v101, 0
    %v157 = vsel %vm113, %v102, 0
    %v160 = vsel %vm113, %v103, 0
    %v163 = vsel %vm113, %v104, 0
    %v166 = vsel %vm113, %v105, 0
    %v169 = vsel %vm113, %v106, 0
    %vm171 = vcmask 1042432
    %v173 = vsel %vm171, %v112, 0
    %175 = vmatpush.msra.mxu0 0.0
    %176 = vmatpush.msra.mxu0 0.0
    %177 = vmatpush.msra.mxu0 0.0
    %178 = vmatpush.msra.mxu0 0.0
    %179 = vmatpush.msra.mxu0 0.0
    %180 = vmatpush.msra.mxu0 0.0
    %181 = vmatpush.msra.mxu0 0.0
    %182 = vmatpush.msra.mxu0 0.0
    %183 = vmatpush.msra.mxu0 0.0
    %184 = vmatpush.msra.mxu0 0.0
    %185 = vmatpush.msra.mxu0 0.0
    %186 = vmatpush.msra.mxu0 0.0
    %187 = vmatpush.msra.mxu0 0.0
    %188 = vmatpush.msra.mxu0 %v173
    %189 = vmatpush.msra.mxu0 %v111
    %190 = vmatpush.msra.mxu0 %v110
    %191 = vmatmul.f32.gmra.mxu0 %v115
    %v192 = vpop.f32.mrf.mxu0
    %v193 = vadd.f32 0.0, %v192
    %194 = vmatmul.f32.gmra.mxu0 %v118
    %v195 = vpop.f32.mrf.mxu0
    %v196 = vadd.f32 0.0, %v195
    %197 = vmatmul.f32.gmra.mxu0 %v121
    %v198 = vpop.f32.mrf.mxu0
    %v199 = vadd.f32 0.0, %v198
    %200 = vmatmul.f32.gmra.mxu0 %v124
    %v201 = vpop.f32.mrf.mxu0
    %v202 = vadd.f32 0.0, %v201
    %203 = vmatmul.f32.gmra.mxu0 %v127
    %v204 = vpop.f32.mrf.mxu0
    %v205 = vadd.f32 0.0, %v204
    %206 = vmatmul.f32.gmra.mxu0 %v130
    %v207 = vpop.f32.mrf.mxu0
    %v208 = vadd.f32 0.0, %v207
    %209 = vmatmul.f32.gmra.mxu0 %v133
    %v210 = vpop.f32.mrf.mxu0
    %v211 = vadd.f32 0.0, %v210
    %212 = vmatmul.f32.gmra.mxu0 %v136
    %v213 = vpop.f32.mrf.mxu0
    %v214 = vadd.f32 0.0, %v213
    %215 = vmatmul.f32.gmra.mxu0 %v139
    %v216 = vpop.f32.mrf.mxu0
    %v217 = vadd.f32 0.0, %v216
    %218 = vmatmul.f32.gmra.mxu0 %v142
    %v219 = vpop.f32.mrf.mxu0
    %v220 = vadd.f32 0.0, %v219
    %221 = vmatmul.f32.gmra.mxu0 %v145
    %v222 = vpop.f32.mrf.mxu0
    %v223 = vadd.f32 0.0, %v222
    %224 = vmatmul.f32.gmra.mxu0 %v148
    %v225 = vpop.f32.mrf.mxu0
    %v226 = vadd.f32 0.0, %v225
    %227 = vmatmul.f32.gmra.mxu0 %v151
    %v228 = vpop.f32.mrf.mxu0
    %v229 = vadd.f32 0.0, %v228
    %230 = vmatmul.f32.gmra.mxu0 %v154
    %v231 = vpop.f32.mrf.mxu0
    %v232 = vadd.f32 0.0, %v231
    %233 = vmatmul.f32.gmra.mxu0 %v157
    %v234 = vpop.f32.mrf.mxu0
    %v235 = vadd.f32 0.0, %v234
    %236 = vmatmul.f32.gmra.mxu0 %v160
    %v237 = vpop.f32.mrf.mxu0
    %v238 = vadd.f32 0.0, %v237
    %239 = vmatmul.f32.gmra.mxu0 %v163
    %v240 = vpop.f32.mrf.mxu0
    %v241 = vadd.f32 0.0, %v240
    %242 = vmatmul.f32.gmra.mxu0 %v166
    %v243 = vpop.f32.mrf.mxu0
    %v244 = vadd.f32 0.0, %v243
    %245 = vmatmul.f32.gmra.mxu0 %v169
    %v246 = vpop.f32.mrf.mxu0
    %v247 = vadd.f32 0.0, %v246
    %248 = vdwg.mxu0
    %v249 = vld [vmem:[%s3] sm:$0xff]
    %v250 = vld [vmem:[%s3 + $0x8] sm:$0xff]
    %v251 = vld [vmem:[%s3 + $0x10] sm:$0xff]
    %v252 = vld [vmem:[%s3 + $0x18] sm:$0xff]
    %v253 = vld [vmem:[%s3 + $0x20] sm:$0xff]
    %v254 = vld [vmem:[%s3 + $0x28] sm:$0xff]
    %v255 = vld [vmem:[%s3 + $0x30] sm:$0xff]
    %v256 = vld [vmem:[%s3 + $0x38] sm:$0xff]
    %v257 = vld [vmem:[%s3 + $0x40] sm:$0xff]
    %v258 = vld [vmem:[%s3 + $0x48] sm:$0xff]
    %v259 = vld [vmem:[%s3 + $0x50] sm:$0xff]
    %v260 = vld [vmem:[%s3 + $0x58] sm:$0xff]
    %v261 = vld [vmem:[%s3 + $0x60] sm:$0xff]
    %v262 = vld [vmem:[%s3 + $0x68] sm:$0xff]
    %v263 = vld [vmem:[%s3 + $0x70] sm:$0xff]
    %v264 = vld [vmem:[%s3 + $0x78] sm:$0xff]
    %v265 = vld [vmem:[%s3 + $0x80] sm:$0xff]
    %v266 = vld [vmem:[%s3 + $0x88] sm:$0xff]
    %v267 = vld [vmem:[%s3 + $0x90] sm:$0x3f]
    %v268 = vld [vmem:[#allocation3] sm:$0xff]
    %v269 = vld [vmem:[#allocation3 + $0x8] sm:$0xff]
    %v270 = vld [vmem:[#allocation3 + $0x10] sm:$0xff]
    %v271 = vld [vmem:[#allocation3 + $0x18] sm:$0xff]
    %v272 = vld [vmem:[#allocation3 + $0x20] sm:$0xff]
    %v273 = vld [vmem:[#allocation3 + $0x28] sm:$0xff]
    %v274 = vld [vmem:[#allocation3 + $0x30] sm:$0xff]
    %v275 = vld [vmem:[#allocation3 + $0x38] sm:$0xff]
    %v276 = vld [vmem:[#allocation3 + $0x40] sm:$0xff]
    %v277 = vld [vmem:[#allocation3 + $0x48] sm:$0xff]
    %v278 = vld [vmem:[#allocation3 + $0x50] sm:$0xff]
    %v279 = vld [vmem:[#allocation3 + $0x58] sm:$0xff]
    %v280 = vld [vmem:[#allocation3 + $0x60] sm:$0xff]
    %v281 = vld [vmem:[#allocation3 + $0x68] sm:$0xff]
    %v282 = vld [vmem:[#allocation3 + $0x70] sm:$0xff]
    %v283 = vld [vmem:[#allocation3 + $0x78] sm:$0xff]
    %v284 = vld [vmem:[#allocation3 + $0x80] sm:$0xff]
    %v285 = vld [vmem:[#allocation3 + $0x88] sm:$0xff]
    %v286 = vld [vmem:[#allocation3 + $0x90] sm:$0x3f]
    %v287 = vadd.f32 %v249, %v268
    %v288 = vadd.f32 %v250, %v269
    %v289 = vadd.f32 %v251, %v270
    %v290 = vadd.f32 %v252, %v271
    %v291 = vadd.f32 %v253, %v272
    %v292 = vadd.f32 %v254, %v273
    %v293 = vadd.f32 %v255, %v274
    %v294 = vadd.f32 %v256, %v275
    %v295 = vadd.f32 %v257, %v276
    %v296 = vadd.f32 %v258, %v277
    %v297 = vadd.f32 %v259, %v278
    %v298 = vadd.f32 %v260, %v279
    %v299 = vadd.f32 %v261, %v280
    %v300 = vadd.f32 %v262, %v281
    %v301 = vadd.f32 %v263, %v282
    %v302 = vadd.f32 %v264, %v283
    %v303 = vadd.f32 %v265, %v284
    %v304 = vadd.f32 %v266, %v285
    %v305 = vadd.f32 %v267, %v286
    %v306 = vadd.f32 %v287, %v193
    %v307 = vadd.f32 %v288, %v196
    %v308 = vadd.f32 %v289, %v199
    %v309 = vadd.f32 %v290, %v202
    %v310 = vadd.f32 %v291, %v205
    %v311 = vadd.f32 %v292, %v208
    %v312 = vadd.f32 %v293, %v211
    %v313 = vadd.f32 %v294, %v214
    %v314 = vadd.f32 %v295, %v217
    %v315 = vadd.f32 %v296, %v220
    %v316 = vadd.f32 %v297, %v223
    %v317 = vadd.f32 %v298, %v226
    %v318 = vadd.f32 %v299, %v229
    %v319 = vadd.f32 %v300, %v232
    %v320 = vadd.f32 %v301, %v235
    %v321 = vadd.f32 %v302, %v238
    %v322 = vadd.f32 %v303, %v241
    %v323 = vadd.f32 %v304, %v244
    %v324 = vadd.f32 %v305, %v247
    %v325 = vld [vmem:[%s8] sm:$0xff]
    %v326 = vld [vmem:[%s8 + $0x8] sm:$0xff]
    %v327 = vld [vmem:[%s8 + $0x10] sm:$0xff]
    %v328 = vld [vmem:[%s8 + $0x18] sm:$0xff]
    %v329 = vld [vmem:[%s8 + $0x20] sm:$0xff]
    %v330 = vld [vmem:[%s8 + $0x28] sm:$0xff]
    %v331 = vld [vmem:[%s8 + $0x30] sm:$0xff]
    %v332 = vld [vmem:[%s8 + $0x38] sm:$0xff]
    %v333 = vld [vmem:[%s8 + $0x40] sm:$0xff]
    %v334 = vld [vmem:[%s8 + $0x48] sm:$0xff]
    %v335 = vld [vmem:[%s8 + $0x50] sm:$0xff]
    %v336 = vld [vmem:[%s8 + $0x58] sm:$0xff]
    %v337 = vld [vmem:[%s8 + $0x60] sm:$0xff]
    %v338 = vld [vmem:[%s8 + $0x68] sm:$0xff]
    %v339 = vld [vmem:[%s8 + $0x70] sm:$0xff]
    %v340 = vld [vmem:[%s8 + $0x78] sm:$0xff]
    %v341 = vld [vmem:[%s8 + $0x80] sm:$0xff]
    %v342 = vld [vmem:[%s8 + $0x88] sm:$0xff]
    %v343 = vld [vmem:[%s8 + $0x90] sm:$0x3f]
    %345 = vset.pattern.permute.xlu0 0
    %346 = vperm.xlu0 %345, %v325
    %v347 = vpop.permute.xlu0 %346
    %350 = vset.pattern.permute.xlu0 0
    %351 = vperm.xlu0 %350, %v326
    %v352 = vpop.permute.xlu0 %351
    %355 = vset.pattern.permute.xlu0 0
    %356 = vperm.xlu0 %355, %v327
    %v357 = vpop.permute.xlu0 %356
    %360 = vset.pattern.permute.xlu0 0
    %361 = vperm.xlu0 %360, %v328
    %v362 = vpop.permute.xlu0 %361
    %365 = vset.pattern.permute.xlu0 0
    %366 = vperm.xlu0 %365, %v329
    %v367 = vpop.permute.xlu0 %366
    %370 = vset.pattern.permute.xlu0 0
    %371 = vperm.xlu0 %370, %v330
    %v372 = vpop.permute.xlu0 %371
    %375 = vset.pattern.permute.xlu0 0
    %376 = vperm.xlu0 %375, %v331
    %v377 = vpop.permute.xlu0 %376
    %380 = vset.pattern.permute.xlu0 0
    %381 = vperm.xlu0 %380, %v332
    %v382 = vpop.permute.xlu0 %381
    %385 = vset.pattern.permute.xlu0 0
    %386 = vperm.xlu0 %385, %v333
    %v387 = vpop.permute.xlu0 %386
    %390 = vset.pattern.permute.xlu0 0
    %391 = vperm.xlu0 %390, %v334
    %v392 = vpop.permute.xlu0 %391
    %395 = vset.pattern.permute.xlu0 0
    %396 = vperm.xlu0 %395, %v335
    %v397 = vpop.permute.xlu0 %396
    %400 = vset.pattern.permute.xlu0 0
    %401 = vperm.xlu0 %400, %v336
    %v402 = vpop.permute.xlu0 %401
    %405 = vset.pattern.permute.xlu0 0
    %406 = vperm.xlu0 %405, %v337
    %v407 = vpop.permute.xlu0 %406
    %410 = vset.pattern.permute.xlu0 0
    %411 = vperm.xlu0 %410, %v338
    %v412 = vpop.permute.xlu0 %411
    %415 = vset.pattern.permute.xlu0 0
    %416 = vperm.xlu0 %415, %v339
    %v417 = vpop.permute.xlu0 %416
    %420 = vset.pattern.permute.xlu0 0
    %421 = vperm.xlu0 %420, %v340
    %v422 = vpop.permute.xlu0 %421
    %425 = vset.pattern.permute.xlu0 0
    %426 = vperm.xlu0 %425, %v341
    %v427 = vpop.permute.xlu0 %426
    %430 = vset.pattern.permute.xlu0 0
    %431 = vperm.xlu0 %430, %v342
    %v432 = vpop.permute.xlu0 %431
    %435 = vset.pattern.permute.xlu0 0
    %436 = vperm.xlu0 %435, %v343
    %v437 = vpop.permute.xlu0 %436
    %v439 = vadd.f32 %v306, %v347
    %v440 = vadd.f32 %v307, %v352
    %v441 = vadd.f32 %v308, %v357
    %v442 = vadd.f32 %v309, %v362
    %v443 = vadd.f32 %v310, %v367
    %v444 = vadd.f32 %v311, %v372
    %v445 = vadd.f32 %v312, %v377
    %v446 = vadd.f32 %v313, %v382
    %v447 = vadd.f32 %v314, %v387
    %v448 = vadd.f32 %v315, %v392
    %v449 = vadd.f32 %v316, %v397
    %v450 = vadd.f32 %v317, %v402
    %v451 = vadd.f32 %v318, %v407
    %v452 = vadd.f32 %v319, %v412
    %v453 = vadd.f32 %v320, %v417
    %v454 = vadd.f32 %v321, %v422
    %v455 = vadd.f32 %v322, %v427
    %v456 = vadd.f32 %v323, %v432
    %v457 = vadd.f32 %v324, %v437
    %v458 = vmax.f32 %v439, 0.0
    %v459 = vmax.f32 %v440, 0.0
    %v460 = vmax.f32 %v441, 0.0
    %v461 = vmax.f32 %v442, 0.0
    %v462 = vmax.f32 %v443, 0.0
    %v463 = vmax.f32 %v444, 0.0
    %v464 = vmax.f32 %v445, 0.0
    %v465 = vmax.f32 %v446, 0.0
    %v466 = vmax.f32 %v447, 0.0
    %v467 = vmax.f32 %v448, 0.0
    %v468 = vmax.f32 %v449, 0.0
    %v469 = vmax.f32 %v450, 0.0
    %v470 = vmax.f32 %v451, 0.0
    %v471 = vmax.f32 %v452, 0.0
    %v472 = vmax.f32 %v453, 0.0
    %v473 = vmax.f32 %v454, 0.0
    %v474 = vmax.f32 %v455, 0.0
    %v475 = vmax.f32 %v456, 0.0
    %v476 = vmax.f32 %v457, 0.0
    %v477 = vld [vmem:[%s9] sm:$0xff]
    %v478 = vld [vmem:[%s9 + $0x8] sm:$0xff]
    %v479 = vld [vmem:[%s9 + $0x10] sm:$0xff]
    %v480 = vld [vmem:[%s9 + $0x18] sm:$0xff]
    %v481 = vld [vmem:[%s9 + $0x20] sm:$0xff]
    %v482 = vld [vmem:[%s9 + $0x28] sm:$0xff]
    %v483 = vld [vmem:[%s9 + $0x30] sm:$0xff]
    %v484 = vld [vmem:[%s9 + $0x38] sm:$0xff]
    %v485 = vld [vmem:[%s9 + $0x40] sm:$0xff]
    %v486 = vld [vmem:[%s9 + $0x48] sm:$0xff]
    %v487 = vld [vmem:[%s9 + $0x50] sm:$0xff]
    %v488 = vld [vmem:[%s9 + $0x58] sm:$0xff]
    %v489 = vld [vmem:[%s9 + $0x60] sm:$0xff]
    %v490 = vld [vmem:[%s9 + $0x68] sm:$0xff]
    %v491 = vld [vmem:[%s9 + $0x70] sm:$0xff]
    %v492 = vld [vmem:[%s9 + $0x78] sm:$0xff]
    %v493 = vld [vmem:[%s9 + $0x80] sm:$0xff]
    %v494 = vld [vmem:[%s9 + $0x88] sm:$0xff]
    %v495 = vld [vmem:[%s9 + $0x90] sm:$0xff]
    %v496 = vld [vmem:[%s9 + $0x98] sm:$0xff]
    %v497 = vld [vmem:[%s9 + $0xa0] sm:$0xff]
    %v498 = vld [vmem:[%s9 + $0xa8] sm:$0xff]
    %v499 = vld [vmem:[%s9 + $0xb0] sm:$0xff]
    %v500 = vld [vmem:[%s9 + $0xb8] sm:$0xff]
    %v501 = vld [vmem:[%s9 + $0xc0] sm:$0xff]
    %v502 = vld [vmem:[%s9 + $0xc8] sm:$0xff]
    %v503 = vld [vmem:[%s9 + $0xd0] sm:$0xff]
    %v504 = vld [vmem:[%s9 + $0xd8] sm:$0xff]
    %v505 = vld [vmem:[%s9 + $0xe0] sm:$0xff]
    %v506 = vld [vmem:[%s9 + $0xe8] sm:$0xff]
    %v507 = vld [vmem:[%s9 + $0xf0] sm:$0xff]
    %v508 = vld [vmem:[%s9 + $0xf8] sm:$0xff]
    %v509 = vld [vmem:[%s9 + $0x100] sm:$0xff]
    %v510 = vld [vmem:[%s9 + $0x108] sm:$0xff]
    %v511 = vld [vmem:[%s9 + $0x110] sm:$0xff]
    %v512 = vld [vmem:[%s9 + $0x118] sm:$0xff]
    %v513 = vld [vmem:[%s9 + $0x120] sm:$0x3f]
    %v514 = vld [vmem:[%s9 + $0x128] sm:$0x3f]
    %v515 = vld [vmem:[%s10] sm:$0xff]
    %v516 = vld [vmem:[%s10 + $0x8] sm:$0xff]
    %v517 = vld [vmem:[%s10 + $0x10] sm:$0xff]
    %v518 = vld [vmem:[%s10 + $0x18] sm:$0xff]
    %v519 = vld [vmem:[%s10 + $0x20] sm:$0xff]
    %v520 = vld [vmem:[%s10 + $0x28] sm:$0xff]
    %v521 = vld [vmem:[%s10 + $0x30] sm:$0xff]
    %v522 = vld [vmem:[%s10 + $0x38] sm:$0xff]
    %v523 = vld [vmem:[%s10 + $0x40] sm:$0xff]
    %v524 = vld [vmem:[%s10 + $0x48] sm:$0xff]
    %v525 = vld [vmem:[%s10 + $0x50] sm:$0xff]
    %v526 = vld [vmem:[%s10 + $0x58] sm:$0xff]
    %v527 = vld [vmem:[%s10 + $0x60] sm:$0xff]
    %v528 = vld [vmem:[%s10 + $0x68] sm:$0xff]
    %v529 = vld [vmem:[%s10 + $0x70] sm:$0xff]
    %v530 = vld [vmem:[%s10 + $0x78] sm:$0xff]
    %v531 = vld [vmem:[%s10 + $0x80] sm:$0xff]
    %v532 = vld [vmem:[%s10 + $0x88] sm:$0xff]
    %v533 = vld [vmem:[%s10 + $0x90] sm:$0x3f]
    %535 = vset.pattern.permute.xlu0 0
    %536 = vperm.xlu0 %535, %v515
    %v537 = vpop.permute.xlu0 %536
    %540 = vset.pattern.permute.xlu0 0
    %541 = vperm.xlu0 %540, %v516
    %v542 = vpop.permute.xlu0 %541
    %545 = vset.pattern.permute.xlu0 0
    %546 = vperm.xlu0 %545, %v517
    %v547 = vpop.permute.xlu0 %546
    %550 = vset.pattern.permute.xlu0 0
    %551 = vperm.xlu0 %550, %v518
    %v552 = vpop.permute.xlu0 %551
    %555 = vset.pattern.permute.xlu0 0
    %556 = vperm.xlu0 %555, %v519
    %v557 = vpop.permute.xlu0 %556
    %560 = vset.pattern.permute.xlu0 0
    %561 = vperm.xlu0 %560, %v520
    %v562 = vpop.permute.xlu0 %561
    %565 = vset.pattern.permute.xlu0 0
    %566 = vperm.xlu0 %565, %v521
    %v567 = vpop.permute.xlu0 %566
    %570 = vset.pattern.permute.xlu0 0
    %571 = vperm.xlu0 %570, %v522
    %v572 = vpop.permute.xlu0 %571
    %575 = vset.pattern.permute.xlu0 0
    %576 = vperm.xlu0 %575, %v523
    %v577 = vpop.permute.xlu0 %576
    %580 = vset.pattern.permute.xlu0 0
    %581 = vperm.xlu0 %580, %v524
    %v582 = vpop.permute.xlu0 %581
    %585 = vset.pattern.permute.xlu0 0
    %586 = vperm.xlu0 %585, %v525
    %v587 = vpop.permute.xlu0 %586
    %590 = vset.pattern.permute.xlu0 0
    %591 = vperm.xlu0 %590, %v526
    %v592 = vpop.permute.xlu0 %591
    %595 = vset.pattern.permute.xlu0 0
    %596 = vperm.xlu0 %595, %v527
    %v597 = vpop.permute.xlu0 %596
    %600 = vset.pattern.permute.xlu0 0
    %601 = vperm.xlu0 %600, %v528
    %v602 = vpop.permute.xlu0 %601
    %605 = vset.pattern.permute.xlu0 0
    %606 = vperm.xlu0 %605, %v529
    %v607 = vpop.permute.xlu0 %606
    %610 = vset.pattern.permute.xlu0 0
    %611 = vperm.xlu0 %610, %v530
    %v612 = vpop.permute.xlu0 %611
    %615 = vset.pattern.permute.xlu0 0
    %616 = vperm.xlu0 %615, %v531
    %v617 = vpop.permute.xlu0 %616
    %620 = vset.pattern.permute.xlu0 0
    %621 = vperm.xlu0 %620, %v532
    %v622 = vpop.permute.xlu0 %621
    %625 = vset.pattern.permute.xlu0 0
    %626 = vperm.xlu0 %625, %v533
    %v627 = vpop.permute.xlu0 %626
    %vm629 = vcmask 179200
    %v631 = vsel %vm629, %v478, 0
    %v634 = vsel %vm629, %v480, 0
    %v637 = vsel %vm629, %v482, 0
    %v640 = vsel %vm629, %v484, 0
    %v643 = vsel %vm629, %v486, 0
    %v646 = vsel %vm629, %v488, 0
    %v649 = vsel %vm629, %v490, 0
    %v652 = vsel %vm629, %v492, 0
    %v655 = vsel %vm629, %v494, 0
    %v658 = vsel %vm629, %v496, 0
    %v661 = vsel %vm629, %v498, 0
    %v664 = vsel %vm629, %v500, 0
    %v667 = vsel %vm629, %v502, 0
    %v670 = vsel %vm629, %v504, 0
    %v673 = vsel %vm629, %v506, 0
    %v676 = vsel %vm629, %v508, 0
    %v679 = vsel %vm629, %v510, 0
    %v682 = vsel %vm629, %v512, 0
    %v685 = vsel %vm629, %v514, 0
    %vm687 = vcmask 1045504
    %v689 = vsel %vm687, %v476, 0
    %691 = vmatpush.msra.mxu0 %v473
    %692 = vmatpush.msra.mxu0 %v472
    %693 = vmatpush.msra.mxu0 %v471
    %694 = vmatpush.msra.mxu0 %v470
    %695 = vmatpush.msra.mxu0 %v469
    %696 = vmatpush.msra.mxu0 %v468
    %697 = vmatpush.msra.mxu0 %v467
    %698 = vmatpush.msra.mxu0 %v466
    %699 = vmatpush.msra.mxu0 %v465
    %700 = vmatpush.msra.mxu0 %v464
    %701 = vmatpush.msra.mxu0 %v463
    %702 = vmatpush.msra.mxu0 %v462
    %703 = vmatpush.msra.mxu0 %v461
    %704 = vmatpush.msra.mxu0 %v460
    %705 = vmatpush.msra.mxu0 %v459
    %706 = vmatpush.msra.mxu0 %v458
    %707 = vmatmul.f32.gmra.mxu0 %v477
    %v708 = vpop.f32.mrf.mxu0
    %v709 = vadd.f32 %v537, %v708
    %710 = vmatmul.f32.gmra.mxu0 %v479
    %v711 = vpop.f32.mrf.mxu0
    %v712 = vadd.f32 %v542, %v711
    %713 = vmatmul.f32.gmra.mxu0 %v481
    %v714 = vpop.f32.mrf.mxu0
    %v715 = vadd.f32 %v547, %v714
    %716 = vmatmul.f32.gmra.mxu0 %v483
    %v717 = vpop.f32.mrf.mxu0
    %v718 = vadd.f32 %v552, %v717
    %719 = vmatmul.f32.gmra.mxu0 %v485
    %v720 = vpop.f32.mrf.mxu0
    %v721 = vadd.f32 %v557, %v720
    %722 = vmatmul.f32.gmra.mxu0 %v487
    %v723 = vpop.f32.mrf.mxu0
    %v724 = vadd.f32 %v562, %v723
    %725 = vmatmul.f32.gmra.mxu0 %v489
    %v726 = vpop.f32.mrf.mxu0
    %v727 = vadd.f32 %v567, %v726
    %728 = vmatmul.f32.gmra.mxu0 %v491
    %v729 = vpop.f32.mrf.mxu0
    %v730 = vadd.f32 %v572, %v729
    %731 = vmatmul.f32.gmra.mxu0 %v493
    %v732 = vpop.f32.mrf.mxu0
    %v733 = vadd.f32 %v577, %v732
    %734 = vmatmul.f32.gmra.mxu0 %v495
    %v735 = vpop.f32.mrf.mxu0
    %v736 = vadd.f32 %v582, %v735
    %737 = vmatmul.f32.gmra.mxu0 %v497
    %v738 = vpop.f32.mrf.mxu0
    %v739 = vadd.f32 %v587, %v738
    %740 = vmatmul.f32.gmra.mxu0 %v499
    %v741 = vpop.f32.mrf.mxu0
    %v742 = vadd.f32 %v592, %v741
    %743 = vmatmul.f32.gmra.mxu0 %v501
    %v744 = vpop.f32.mrf.mxu0
    %v745 = vadd.f32 %v597, %v744
    %746 = vmatmul.f32.gmra.mxu0 %v503
    %v747 = vpop.f32.mrf.mxu0
    %v748 = vadd.f32 %v602, %v747
    %749 = vmatmul.f32.gmra.mxu0 %v505
    %v750 = vpop.f32.mrf.mxu0
    %v751 = vadd.f32 %v607, %v750
    %752 = vmatmul.f32.gmra.mxu0 %v507
    %v753 = vpop.f32.mrf.mxu0
    %v754 = vadd.f32 %v612, %v753
    %755 = vmatmul.f32.gmra.mxu0 %v509
    %v756 = vpop.f32.mrf.mxu0
    %v757 = vadd.f32 %v617, %v756
    %758 = vmatmul.f32.gmra.mxu0 %v511
    %v759 = vpop.f32.mrf.mxu0
    %v760 = vadd.f32 %v622, %v759
    %761 = vmatmul.f32.gmra.mxu0 %v513
    %v762 = vpop.f32.mrf.mxu0
    %v763 = vadd.f32 %v627, %v762
    %764 = vdwg.mxu0
    %765 = vmatpush.msra.mxu0 0.0
    %766 = vmatpush.msra.mxu0 0.0
    %767 = vmatpush.msra.mxu0 0.0
    %768 = vmatpush.msra.mxu0 0.0
    %769 = vmatpush.msra.mxu0 0.0
    %770 = vmatpush.msra.mxu0 0.0
    %771 = vmatpush.msra.mxu0 0.0
    %772 = vmatpush.msra.mxu0 0.0
    %773 = vmatpush.msra.mxu0 0.0
    %774 = vmatpush.msra.mxu0 0.0
    %775 = vmatpush.msra.mxu0 0.0
    %776 = vmatpush.msra.mxu0 0.0
    %777 = vmatpush.msra.mxu0 0.0
    %778 = vmatpush.msra.mxu0 %v689
    %779 = vmatpush.msra.mxu0 %v475
    %780 = vmatpush.msra.mxu0 %v474
    %781 = vmatmul.f32.gmra.mxu0 %v631
    %v782 = vpop.f32.mrf.mxu0
    %v783 = vadd.f32 %v709, %v782
    %784 = vmatmul.f32.gmra.mxu0 %v634
    %v785 = vpop.f32.mrf.mxu0
    %v786 = vadd.f32 %v712, %v785
    %787 = vmatmul.f32.gmra.mxu0 %v637
    %v788 = vpop.f32.mrf.mxu0
    %v789 = vadd.f32 %v715, %v788
    %790 = vmatmul.f32.gmra.mxu0 %v640
    %v791 = vpop.f32.mrf.mxu0
    %v792 = vadd.f32 %v718, %v791
    %793 = vmatmul.f32.gmra.mxu0 %v643
    %v794 = vpop.f32.mrf.mxu0
    %v795 = vadd.f32 %v721, %v794
    %796 = vmatmul.f32.gmra.mxu0 %v646
    %v797 = vpop.f32.mrf.mxu0
    %v798 = vadd.f32 %v724, %v797
    %799 = vmatmul.f32.gmra.mxu0 %v649
    %v800 = vpop.f32.mrf.mxu0
    %v801 = vadd.f32 %v727, %v800
    %802 = vmatmul.f32.gmra.mxu0 %v652
    %v803 = vpop.f32.mrf.mxu0
    %v804 = vadd.f32 %v730, %v803
    %805 = vmatmul.f32.gmra.mxu0 %v655
    %v806 = vpop.f32.mrf.mxu0
    %v807 = vadd.f32 %v733, %v806
    %808 = vmatmul.f32.gmra.mxu0 %v658
    %v809 = vpop.f32.mrf.mxu0
    %v810 = vadd.f32 %v736, %v809
    %811 = vmatmul.f32.gmra.mxu0 %v661
    %v812 = vpop.f32.mrf.mxu0
    %v813 = vadd.f32 %v739, %v812
    %814 = vmatmul.f32.gmra.mxu0 %v664
    %v815 = vpop.f32.mrf.mxu0
    %v816 = vadd.f32 %v742, %v815
    %817 = vmatmul.f32.gmra.mxu0 %v667
    %v818 = vpop.f32.mrf.mxu0
    %v819 = vadd.f32 %v745, %v818
    %820 = vmatmul.f32.gmra.mxu0 %v670
    %v821 = vpop.f32.mrf.mxu0
    %v822 = vadd.f32 %v748, %v821
    %823 = vmatmul.f32.gmra.mxu0 %v673
    %v824 = vpop.f32.mrf.mxu0
    %v825 = vadd.f32 %v751, %v824
    %826 = vmatmul.f32.gmra.mxu0 %v676
    %v827 = vpop.f32.mrf.mxu0
    %v828 = vadd.f32 %v754, %v827
    %829 = vmatmul.f32.gmra.mxu0 %v679
    %v830 = vpop.f32.mrf.mxu0
    %v831 = vadd.f32 %v757, %v830
    %832 = vmatmul.f32.gmra.mxu0 %v682
    %v833 = vpop.f32.mrf.mxu0
    %v834 = vadd.f32 %v760, %v833
    %835 = vmatmul.f32.gmra.mxu0 %v685
    %v836 = vpop.f32.mrf.mxu0
    %v837 = vadd.f32 %v763, %v836
    %838 = vdwg.mxu0
    %v839 = vmax.f32 %v783, 0.0
    %v840 = vmax.f32 %v786, 0.0
    %v841 = vmax.f32 %v789, 0.0
    %v842 = vmax.f32 %v792, 0.0
    %v843 = vmax.f32 %v795, 0.0
    %v844 = vmax.f32 %v798, 0.0
    %v845 = vmax.f32 %v801, 0.0
    %v846 = vmax.f32 %v804, 0.0
    %v847 = vmax.f32 %v807, 0.0
    %v848 = vmax.f32 %v810, 0.0
    %v849 = vmax.f32 %v813, 0.0
    %v850 = vmax.f32 %v816, 0.0
    %v851 = vmax.f32 %v819, 0.0
    %v852 = vmax.f32 %v822, 0.0
    %v853 = vmax.f32 %v825, 0.0
    %v854 = vmax.f32 %v828, 0.0
    %v855 = vmax.f32 %v831, 0.0
    %v856 = vmax.f32 %v834, 0.0
    %v857 = vmax.f32 %v837, 0.0
    %v858 = vld [vmem:[%s11] sm:$0x3]
    %v859 = vld [vmem:[#allocation2] sm:$0x1]
    %861 = vset.pattern.permute.xlu0 0
    %862 = vperm.xlu0 %861, %v859
    %v863 = vpop.permute.xlu0 %862
    %v865 = vperm.slane %v863, 0
    %v867 = vperm.slane %v858, 0
    %v868 = vperm.slane %v858, 1
    %v870 = vsel %vm629, %v868, 0
    %v873 = vsel %vm687, %v857, 0
    %875 = vmatpush.msra.mxu0 %v854
    %876 = vmatpush.msra.mxu0 %v853
    %877 = vmatpush.msra.mxu0 %v852
    %878 = vmatpush.msra.mxu0 %v851
    %879 = vmatpush.msra.mxu0 %v850
    %880 = vmatpush.msra.mxu0 %v849
    %881 = vmatpush.msra.mxu0 %v848
    %882 = vmatpush.msra.mxu0 %v847
    %883 = vmatpush.msra.mxu0 %v846
    %884 = vmatpush.msra.mxu0 %v845
    %885 = vmatpush.msra.mxu0 %v844
    %886 = vmatpush.msra.mxu0 %v843
    %887 = vmatpush.msra.mxu0 %v842
    %888 = vmatpush.msra.mxu0 %v841
    %889 = vmatpush.msra.mxu0 %v840
    %890 = vmatpush.msra.mxu0 %v839
    %891 = vmatmul.f32.gmra.mxu0 %v867
    %v892 = vpop.f32.mrf.mxu0
    %v893 = vadd.f32 %v865, %v892
    %894 = vdwg.mxu0
    %895 = vmatpush.msra.mxu0 0.0
    %896 = vmatpush.msra.mxu0 0.0
    %897 = vmatpush.msra.mxu0 0.0
    %898 = vmatpush.msra.mxu0 0.0
    %899 = vmatpush.msra.mxu0 0.0
    %900 = vmatpush.msra.mxu0 0.0
    %901 = vmatpush.msra.mxu0 0.0
    %902 = vmatpush.msra.mxu0 0.0
    %903 = vmatpush.msra.mxu0 0.0
    %904 = vmatpush.msra.mxu0 0.0
    %905 = vmatpush.msra.mxu0 0.0
    %906 = vmatpush.msra.mxu0 0.0
    %907 = vmatpush.msra.mxu0 0.0
    %908 = vmatpush.msra.mxu0 %v873
    %909 = vmatpush.msra.mxu0 %v856
    %910 = vmatpush.msra.mxu0 %v855
    %911 = vmatmul.f32.gmra.mxu0 %v870
    %v912 = vpop.f32.mrf.mxu0
    %v913 = vadd.f32 %v893, %v912
    %914 = vdwg.mxu0
    %v915 = vld [vmem:[%s5] sm:$0x1]
    %v916 = vadd.f32 %v913, %v915
    %v917 = vld [vmem:[%s6] sm:$0x1]
    %v918 = vadd.f32 %v916, %v917
    %919 = vst [vmem:[#allocation6] sm:$0x1] %v918
    // Predicated region
    $region58: #{tpu_custom_call.1} parent=1 // pred_check
      _
    $region59: #{tpu_custom_call.1} parent=1 // pred_check_branch
      %921 = sbr.rel (0) target = $region61
    $region60: #{tpu_custom_call.1} parent=1 // pred_region
      %923 = vsyncadd [#allocation5], 0
      %s925 = sshll.u32 [#allocation6], 4
      %s926 = int_to_ptr.vmem [resolvable:$true] %s925
      %s927 = sshll.u32 %s13, 4
      %s928 = int_to_ptr.hbm [resolvable:$true] %s927
      %930 = dma.vmem_to_hbm [thread:$0]  %s926, 16, %s928, [#allocation5]
    $region61: #{tpu_custom_call.1} parent=1 // pred_fallthru
      _
    // Predicated region
    $region62: #{tpu_custom_call.1} parent=1 // pred_check
      _
    $region63: #{tpu_custom_call.1} parent=1 // pred_check_branch
      %932 = sbr.rel (0) target = $region65
    $region64: #{tpu_custom_call.1} parent=1 // pred_region
      %934 = dma.done [#allocation5], 16
    $region65: #{tpu_custom_call.1} parent=1 // pred_fallthru
      _
    %935 = vsyncpa [#allocation4], 1
    %936 = vsyncpa [#allocation5], 1

</llo_original>
